<compile_context>
chip_gen: v5e
topology: v5e:2x2
jax: 0.10.0
libtpu: 0.0.40
codegen_flags: <defaults>
</compile_context>

<pallas_src>
import functools

import jax
import jax.numpy as jnp
from jax.experimental import pallas as pl
from jax.experimental.pallas import tpu as pltpu


def _triplet_all_loss_kernel(emb_blk_ref, emb_all_ref, sq_all_ref, sq_blk_ref,
                             lab_all_ref, lab_blk_ref, num_ref, den_ref,
                             dmat_ref, pos_ref, *, margin, eps, n, ta):
    b = pl.program_id(0)

    # ---- Gram block on the MXU: (N, D) x (TA, D)^T -> (N, TA), f32 acc -----
    # Transposed layout: rows j = all samples, columns a = anchors of block b.
    prod = jax.lax.dot_general(
        emb_all_ref[...], emb_blk_ref[...], (((1,), (1,)), ((), ())),
        preferred_element_type=jnp.float32)                       # prod[j, a]

    # ---- identity mask for this block: j == global anchor index ------------
    row_j = jax.lax.broadcasted_iota(jnp.int32, (n, 1), 0)        # (N, 1)
    col_a = b * ta + jax.lax.broadcasted_iota(jnp.int32, (1, ta), 1)   # (1, TA)
    eye_b = row_j == col_a                                        # (N, TA) bool

    # ---- pdist rows for this anchor block -----------------------------------
    res = jnp.maximum(sq_all_ref[...] + sq_blk_ref[...] - 2.0 * prod, 0.0)
    # Reference derives the norms from diag(prod), so diag(res) is exactly 0
    # there; enforce the same here (independent of matmul rounding).
    res = jnp.where(eye_b, 0.0, res)
    dmat_ref[...] = jnp.sqrt(jnp.maximum(res, eps))               # d[a, j] (transposed)

    # ---- positive-pair mask rows: eq(labels) - eye ---------------------------
    same = lab_all_ref[...] == lab_blk_ref[...]                   # (N, TA) bool
    pos = same.astype(jnp.float32) - eye_b.astype(jnp.float32)    # pos[a, j] (transposed)
    pos_ref[...] = pos

    # ---- denominator analytically: sum_a P[a] * (n - P[a]) -------------------
    p_cnt = jnp.sum(pos, axis=0, keepdims=True)                   # (1, TA)
    den_blk = jnp.sum(p_cnt * (jnp.float32(n) - p_cnt))

    # ---- numerator: loop over the "negative" index i -------------------------
    # Per i: ~3 element-wide VPU passes + one reduce over j into a (1, TA)
    # accumulator carried in vregs.  No MXU, no (N, N) accumulator RMW.
    def body(i, acc):
        cm = dmat_ref[pl.ds(i, 1), :] - margin                    # (1, TA): d[a,i]-margin
        u = 1.0 - pos_ref[pl.ds(i, 1), :]                         # (1, TA): 1-pos[a,i]
        r = jnp.maximum(dmat_ref[...] - cm, 0.0)                  # (N, TA): relu(d[a,j]-d[a,i]+m)
        s = jnp.sum(pos_ref[...] * r, axis=0, keepdims=True)      # (1, TA): sum_j pos*relu
        return acc + u * s

    acc = jax.lax.fori_loop(0, n, body, jnp.zeros((1, ta), jnp.float32),
                            unroll=min(8, n))
    num_blk = jnp.sum(acc)

    # ---- per-block partials as full, lane-dense (8, 128) tiles ---------------
    num_ref[...] = jnp.full((8, 128), num_blk, jnp.float32)
    den_ref[...] = jnp.full((8, 128), den_blk, jnp.float32)


def _pick_row_block(n):
    # Anchor block size.  Lane-blocked (1, N) inputs require the block to be a
    # multiple of 128 (or all of N), so blocks come from {256, 128}.
    if n > 128:
        for ta in (256, 128):
            if n % ta == 0 and n // ta >= 2:
                return ta
    # TODO(synk): N not a multiple of 128 runs as a single anchor block (no
    # ragged-tail masking); fine for small/medium N.
    return n


def _vmem_limit_bytes(n, d, ta, itemsize):
    need = 2 * (n + ta) * d * itemsize        # embeddings (full + blocked, 2-buffered)
    need += 2 * n * ta * 4                    # dmat / pos scratch
    need += 6 * n * ta * 4                    # elementwise temporaries
    need += 16 * n * 4 + (2 << 20)            # small vectors + headroom
    try:
        phys = int(pltpu.get_tpu_info().vmem_capacity_bytes)
    except Exception:
        phys = 64 << 20                        # conservative (v7x physical VMEM)
    return int(max(16 << 20, min(int(need * 1.25), phys * 3 // 4)))


def triplet_all_loss(embeddings, labels, margin=1.0, eps=1e-4):
    """embeddings: (N, D) float (f32 or bf16); labels: (N,) int. Returns scalar loss."""
    n, d = embeddings.shape
    ta = _pick_row_block(n)
    nb = n // ta

    # One O(N*D) pass for the squared norms; passed as (N,1) and (1,N) views so
    # the kernel never needs an in-kernel transpose.  Labels likewise.
    xf = embeddings.astype(jnp.float32)
    sqn = jnp.sum(xf * xf, axis=1)
    sq_col = sqn.reshape(n, 1)
    sq_row = sqn.reshape(1, n)
    lab_col = labels.reshape(n, 1).astype(jnp.int32)
    lab_row = labels.reshape(1, n).astype(jnp.int32)

    kernel = functools.partial(_triplet_all_loss_kernel,
                               margin=float(margin), eps=float(eps), n=n, ta=ta)

    num_par, den_par = pl.pallas_call(
        kernel,
        out_shape=(jax.ShapeDtypeStruct((nb * 8, 128), jnp.float32),
                   jax.ShapeDtypeStruct((nb * 8, 128), jnp.float32)),
        grid=(nb,),
        in_specs=[
            pl.BlockSpec((ta, d), lambda b: (b, 0)),    # anchors of block b
            pl.BlockSpec((n, d), lambda b: (0, 0)),     # all samples (resident)
            pl.BlockSpec((n, 1), lambda b: (0, 0)),     # |x_j|^2 column
            pl.BlockSpec((1, ta), lambda b: (0, b)),    # |x_a|^2 row (block)
            pl.BlockSpec((n, 1), lambda b: (0, 0)),     # labels column
            pl.BlockSpec((1, ta), lambda b: (0, b)),    # labels row (block)
        ],
        out_specs=(
            pl.BlockSpec((8, 128), lambda b: (b, 0)),
            pl.BlockSpec((8, 128), lambda b: (b, 0)),
        ),
        scratch_shapes=[pltpu.VMEM((n, ta), jnp.float32),    # d rows (transposed)
                        pltpu.VMEM((n, ta), jnp.float32)],   # pos rows (transposed)
        compiler_params=pltpu.CompilerParams(
            dimension_semantics=("parallel",),
            vmem_limit_bytes=_vmem_limit_bytes(n, d, ta,
                                               embeddings.dtype.itemsize)),
    )(embeddings, embeddings, sq_col, sq_row, lab_col, lab_row)

    num = jnp.sum(num_par[::8, 0])
    den = jnp.sum(den_par[::8, 0])
    return num / den


def _reference_loss(embeddings, labels, margin=1.0, eps=1e-4):
    # Pure-JAX reference mirroring the PyTorch module exactly.
    x = embeddings.astype(jnp.float32)
    prod = x @ x.T
    norm = jnp.diag(prod)[:, None]
    res = jnp.maximum(norm + norm.T - 2.0 * prod, 0.0)
    d = jnp.sqrt(jnp.maximum(res, eps))
    n = d.shape[0]
    pos = (labels[:, None] == labels[None, :]).astype(jnp.float32) - jnp.eye(n)
    T = jnp.broadcast_to(d[:, None, :], (n, n, n))
    M = pos[:, None, :] * (1.0 - pos[:, :, None])
    dist_diff = jax.nn.relu(T - jnp.swapaxes(T, 1, 2) + margin)
    return (M * dist_diff).sum() / M.sum()


if __name__ == "__main__":
    key = jax.random.PRNGKey(0)
    k1, k2 = jax.random.split(key)

    # Small single-block case.
    n1, d1 = 8, 32
    emb1 = jax.random.normal(k1, (n1, d1), dtype=jnp.float32)
    lab1 = jnp.array([0, 0, 1, 1, 2, 2, 3, 3], dtype=jnp.int32)
    loss1 = jax.block_until_ready(triplet_all_loss(emb1, lab1, margin=1.0))
    ref1 = _reference_loss(emb1, lab1, margin=1.0)
    assert jnp.allclose(loss1, ref1, rtol=1e-4, atol=1e-5), (loss1, ref1)

    # Two anchor blocks of 128 -> exercises the grid / megacore path.
    n2, d2 = 256, 32
    emb2 = jax.random.normal(k2, (n2, d2), dtype=jnp.float32)
    lab2 = jnp.arange(n2, dtype=jnp.int32) // 4
    loss2 = jax.block_until_ready(triplet_all_loss(emb2, lab2, margin=1.0))
    ref2 = _reference_loss(emb2, lab2, margin=1.0)
    assert jnp.allclose(loss2, ref2, rtol=1e-3, atol=1e-4), (loss2, ref2)

    print("KERNEL_OK")
</pallas_src>

<mosaic_0001>
module attributes {stable_mosaic.version = 11 : i64} {
  func.func @_triplet_all_loss_kernel(%arg0: i32, %arg1: memref<8x32xf32, #tpu.memory_space<vmem>>, %arg2: memref<8x32xf32, #tpu.memory_space<vmem>>, %arg3: memref<8x1xf32, #tpu.memory_space<vmem>>, %arg4: memref<1x8xf32, #tpu.memory_space<vmem>>, %arg5: memref<8x1xi32, #tpu.memory_space<vmem>>, %arg6: memref<1x8xi32, #tpu.memory_space<vmem>>, %arg7: memref<8x128xf32, #tpu.memory_space<vmem>>, %arg8: memref<8x128xf32, #tpu.memory_space<vmem>>, %arg9: memref<8x8xf32, #tpu.memory_space<vmem>>, %arg10: memref<8x8xf32, #tpu.memory_space<vmem>>) attributes {dimension_semantics = [#tpu.dimension_semantics<parallel>], iteration_bounds = array<i64: 1>, scalar_prefetch = 0 : i64, scratch_operands = 2 : i64, tpu.core_type = #tpu.core_type<tc>, window_params = [{transform_indices = @transform_0, window_bounds = array<i64: 8, 32>}, {pipeline_mode = #tpu.pipeline_mode<synchronous>, transform_indices = @transform_1, window_bounds = array<i64: 8, 32>}, {pipeline_mode = #tpu.pipeline_mode<synchronous>, transform_indices = @transform_2, window_bounds = array<i64: 8, 1>}, {transform_indices = @transform_3, window_bounds = array<i64: 1, 8>}, {pipeline_mode = #tpu.pipeline_mode<synchronous>, transform_indices = @transform_4, window_bounds = array<i64: 8, 1>}, {transform_indices = @transform_5, window_bounds = array<i64: 1, 8>}, {transform_indices = @transform_6, window_bounds = array<i64: 8, 128>}, {transform_indices = @transform_7, window_bounds = array<i64: 8, 128>}]} {
    %c0 = arith.constant 0 : index
    %c0_0 = arith.constant 0 : index
    %0 = vector.load %arg2[%c0, %c0_0] : memref<8x32xf32, #tpu.memory_space<vmem>>, vector<8x32xf32>
    %c0_1 = arith.constant 0 : index
    %c0_2 = arith.constant 0 : index
    %1 = vector.load %arg1[%c0_1, %c0_2] : memref<8x32xf32, #tpu.memory_space<vmem>>, vector<8x32xf32>
    %cst = arith.constant dense<0.000000e+00> : vector<8x8xf32>
    %2 = tpu.matmul %0, %1, %cst {dimension_numbers = #tpu.dot_dimension_numbers<[1], [1], [0], [0], [0, 0, 1, 0], [], []>} : vector<8x32xf32>, vector<8x32xf32>, vector<8x8xf32> -> vector<8x8xf32>
    %3 = tpu.iota {dimensions = array<i32: 0>} : vector<8x1xi32>
    %c8_i32 = arith.constant 8 : i32
    %4 = arith.muli %arg0, %c8_i32 : i32
    %5 = tpu.iota {dimensions = array<i32: 1>} : vector<1x8xi32>
    %6 = vector.broadcast %4 : i32 to vector<1x8xi32>
    %7 = arith.addi %6, %5 : vector<1x8xi32>
    %8 = vector.broadcast %3 : vector<8x1xi32> to vector<8x8xi32>
    %9 = vector.broadcast %7 : vector<1x8xi32> to vector<8x8xi32>
    %10 = arith.cmpi eq, %8, %9 : vector<8x8xi32>
    %c0_3 = arith.constant 0 : index
    %c0_4 = arith.constant 0 : index
    %11 = vector.load %arg3[%c0_3, %c0_4] : memref<8x1xf32, #tpu.memory_space<vmem>>, vector<8x1xf32>
    %c0_5 = arith.constant 0 : index
    %c0_6 = arith.constant 0 : index
    %12 = vector.load %arg4[%c0_5, %c0_6] : memref<1x8xf32, #tpu.memory_space<vmem>>, vector<1x8xf32>
    %13 = vector.broadcast %11 : vector<8x1xf32> to vector<8x8xf32>
    %14 = vector.broadcast %12 : vector<1x8xf32> to vector<8x8xf32>
    %15 = arith.addf %13, %14 : vector<8x8xf32>
    %cst_7 = arith.constant 2.000000e+00 : f32
    %16 = vector.broadcast %cst_7 : f32 to vector<8x8xf32>
    %17 = arith.mulf %16, %2 : vector<8x8xf32>
    %18 = arith.subf %15, %17 : vector<8x8xf32>
    %cst_8 = arith.constant 0.000000e+00 : f32
    %19 = vector.broadcast %cst_8 : f32 to vector<8x8xf32>
    %20 = arith.maximumf %18, %19 : vector<8x8xf32>
    %cst_9 = arith.constant 0.000000e+00 : f32
    %21 = vector.broadcast %cst_9 : f32 to vector<8x8xf32>
    %22 = arith.select %10, %21, %20 : vector<8x8xi1>, vector<8x8xf32>
    %cst_10 = arith.constant 9.99999974E-5 : f32
    %23 = vector.broadcast %cst_10 : f32 to vector<8x8xf32>
    %24 = arith.maximumf %22, %23 : vector<8x8xf32>
    %25 = math.sqrt %24 : vector<8x8xf32>
    %c0_11 = arith.constant 0 : index
    %c0_12 = arith.constant 0 : index
    %26 = vector.load %arg9[%c0_11, %c0_12] : memref<8x8xf32, #tpu.memory_space<vmem>>, vector<8x8xf32>
    tpu.vector_store %arg9[%c0_11, %c0_12], %25 {strides = array<i32>} : memref<8x8xf32, #tpu.memory_space<vmem>>, vector<8x8xf32>,
    %c0_13 = arith.constant 0 : index
    %c0_14 = arith.constant 0 : index
    %27 = vector.load %arg5[%c0_13, %c0_14] : memref<8x1xi32, #tpu.memory_space<vmem>>, vector<8x1xi32>
    %c0_15 = arith.constant 0 : index
    %c0_16 = arith.constant 0 : index
    %28 = vector.load %arg6[%c0_15, %c0_16] : memref<1x8xi32, #tpu.memory_space<vmem>>, vector<1x8xi32>
    %29 = vector.broadcast %27 : vector<8x1xi32> to vector<8x8xi32>
    %30 = vector.broadcast %28 : vector<1x8xi32> to vector<8x8xi32>
    %31 = arith.cmpi eq, %29, %30 : vector<8x8xi32>
    %32 = arith.extui %31 : vector<8x8xi1> to vector<8x8xi32>
    %33 = arith.sitofp %32 : vector<8x8xi32> to vector<8x8xf32>
    %34 = arith.extui %10 : vector<8x8xi1> to vector<8x8xi32>
    %35 = arith.sitofp %34 : vector<8x8xi32> to vector<8x8xf32>
    %36 = arith.subf %33, %35 : vector<8x8xf32>
    %c0_17 = arith.constant 0 : index
    %c0_18 = arith.constant 0 : index
    %37 = vector.load %arg10[%c0_17, %c0_18] : memref<8x8xf32, #tpu.memory_space<vmem>>, vector<8x8xf32>
    tpu.vector_store %arg10[%c0_17, %c0_18], %36 {strides = array<i32>} : memref<8x8xf32, #tpu.memory_space<vmem>>, vector<8x8xf32>,
    %cst_19 = arith.constant dense<0.000000e+00> : vector<8xf32>
    %38 = vector.multi_reduction <add>, %36, %cst_19 [0] : vector<8x8xf32> to vector<8xf32>
    %39 = vector.shape_cast %38 : vector<8xf32> to vector<1x8xf32>
    %cst_20 = arith.constant 8.000000e+00 : f32
    %40 = vector.broadcast %cst_20 : f32 to vector<1x8xf32>
    %41 = arith.subf %40, %39 : vector<1x8xf32>
    %42 = arith.mulf %39, %41 : vector<1x8xf32>
    %43 = vector.shape_cast %42 : vector<1x8xf32> to vector<1x1x8xf32>
    %cst_21 = arith.constant dense<0.000000e+00> : vector<1xf32>
    %44 = vector.multi_reduction <add>, %43, %cst_21 [1, 2] : vector<1x1x8xf32> to vector<1xf32>
    %45 = vector.shape_cast %44 : vector<1xf32> to vector<1x1x1xf32>
    %46 = vector.extract %45[0, 0, 0] : f32 from vector<1x1x1xf32>
    %cst_22 = arith.constant 0.000000e+00 : f32
    %47 = vector.broadcast %cst_22 : f32 to vector<1x8xf32>
    %c0_i32 = arith.constant 0 : i32
    %48 = arith.index_cast %c0_i32 : i32 to index
    %c0_23 = arith.constant 0 : index
    %49 = vector.load %arg9[%48, %c0_23] : memref<8x8xf32, #tpu.memory_space<vmem>>, vector<1x8xf32>
    %cst_24 = arith.constant 1.000000e+00 : f32
    %50 = vector.broadcast %cst_24 : f32 to vector<1x8xf32>
    %51 = arith.subf %49, %50 : vector<1x8xf32>
    %52 = arith.index_cast %c0_i32 : i32 to index
    %c0_25 = arith.constant 0 : index
    %53 = vector.load %arg10[%52, %c0_25] : memref<8x8xf32, #tpu.memory_space<vmem>>, vector<1x8xf32>
    %cst_26 = arith.constant 1.000000e+00 : f32
    %54 = vector.broadcast %cst_26 : f32 to vector<1x8xf32>
    %55 = arith.subf %54, %53 : vector<1x8xf32>
    %c0_27 = arith.constant 0 : index
    %c0_28 = arith.constant 0 : index
    %56 = vector.load %arg9[%c0_27, %c0_28] : memref<8x8xf32, #tpu.memory_space<vmem>>, vector<8x8xf32>
    %57 = vector.broadcast %51 : vector<1x8xf32> to vector<8x8xf32>
    %58 = arith.subf %56, %57 : vector<8x8xf32>
    %cst_29 = arith.constant 0.000000e+00 : f32
    %59 = vector.broadcast %cst_29 : f32 to vector<8x8xf32>
    %60 = arith.maximumf %58, %59 : vector<8x8xf32>
    %c0_30 = arith.constant 0 : index
    %c0_31 = arith.constant 0 : index
    %61 = vector.load %arg10[%c0_30, %c0_31] : memref<8x8xf32, #tpu.memory_space<vmem>>, vector<8x8xf32>
    %62 = arith.mulf %61, %60 : vector<8x8xf32>
    %cst_32 = arith.constant dense<0.000000e+00> : vector<8xf32>
    %63 = vector.multi_reduction <add>, %62, %cst_32 [0] : vector<8x8xf32> to vector<8xf32>
    %64 = vector.shape_cast %63 : vector<8xf32> to vector<1x8xf32>
    %65 = arith.mulf %55, %64 : vector<1x8xf32>
    %66 = arith.addf %47, %65 : vector<1x8xf32>
    %c1_i32 = arith.constant 1 : i32
    %67 = arith.index_cast %c1_i32 : i32 to index
    %c0_33 = arith.constant 0 : index
    %68 = vector.load %arg9[%67, %c0_33] : memref<8x8xf32, #tpu.memory_space<vmem>>, vector<1x8xf32>
    %cst_34 = arith.constant 1.000000e+00 : f32
    %69 = vector.broadcast %cst_34 : f32 to vector<1x8xf32>
    %70 = arith.subf %68, %69 : vector<1x8xf32>
    %71 = arith.index_cast %c1_i32 : i32 to index
    %c0_35 = arith.constant 0 : index
    %72 = vector.load %arg10[%71, %c0_35] : memref<8x8xf32, #tpu.memory_space<vmem>>, vector<1x8xf32>
    %cst_36 = arith.constant 1.000000e+00 : f32
    %73 = vector.broadcast %cst_36 : f32 to vector<1x8xf32>
    %74 = arith.subf %73, %72 : vector<1x8xf32>
    %c0_37 = arith.constant 0 : index
    %c0_38 = arith.constant 0 : index
    %75 = vector.load %arg9[%c0_37, %c0_38] : memref<8x8xf32, #tpu.memory_space<vmem>>, vector<8x8xf32>
    %76 = vector.broadcast %70 : vector<1x8xf32> to vector<8x8xf32>
    %77 = arith.subf %75, %76 : vector<8x8xf32>
    %cst_39 = arith.constant 0.000000e+00 : f32
    %78 = vector.broadcast %cst_39 : f32 to vector<8x8xf32>
    %79 = arith.maximumf %77, %78 : vector<8x8xf32>
    %c0_40 = arith.constant 0 : index
    %c0_41 = arith.constant 0 : index
    %80 = vector.load %arg10[%c0_40, %c0_41] : memref<8x8xf32, #tpu.memory_space<vmem>>, vector<8x8xf32>
    %81 = arith.mulf %80, %79 : vector<8x8xf32>
    %cst_42 = arith.constant dense<0.000000e+00> : vector<8xf32>
    %82 = vector.multi_reduction <add>, %81, %cst_42 [0] : vector<8x8xf32> to vector<8xf32>
    %83 = vector.shape_cast %82 : vector<8xf32> to vector<1x8xf32>
    %84 = arith.mulf %74, %83 : vector<1x8xf32>
    %85 = arith.addf %66, %84 : vector<1x8xf32>
    %c2_i32 = arith.constant 2 : i32
    %86 = arith.index_cast %c2_i32 : i32 to index
    %c0_43 = arith.constant 0 : index
    %87 = vector.load %arg9[%86, %c0_43] : memref<8x8xf32, #tpu.memory_space<vmem>>, vector<1x8xf32>
    %cst_44 = arith.constant 1.000000e+00 : f32
    %88 = vector.broadcast %cst_44 : f32 to vector<1x8xf32>
    %89 = arith.subf %87, %88 : vector<1x8xf32>
    %90 = arith.index_cast %c2_i32 : i32 to index
    %c0_45 = arith.constant 0 : index
    %91 = vector.load %arg10[%90, %c0_45] : memref<8x8xf32, #tpu.memory_space<vmem>>, vector<1x8xf32>
    %cst_46 = arith.constant 1.000000e+00 : f32
    %92 = vector.broadcast %cst_46 : f32 to vector<1x8xf32>
    %93 = arith.subf %92, %91 : vector<1x8xf32>
    %c0_47 = arith.constant 0 : index
    %c0_48 = arith.constant 0 : index
    %94 = vector.load %arg9[%c0_47, %c0_48] : memref<8x8xf32, #tpu.memory_space<vmem>>, vector<8x8xf32>
    %95 = vector.broadcast %89 : vector<1x8xf32> to vector<8x8xf32>
    %96 = arith.subf %94, %95 : vector<8x8xf32>
    %cst_49 = arith.constant 0.000000e+00 : f32
    %97 = vector.broadcast %cst_49 : f32 to vector<8x8xf32>
    %98 = arith.maximumf %96, %97 : vector<8x8xf32>
    %c0_50 = arith.constant 0 : index
    %c0_51 = arith.constant 0 : index
    %99 = vector.load %arg10[%c0_50, %c0_51] : memref<8x8xf32, #tpu.memory_space<vmem>>, vector<8x8xf32>
    %100 = arith.mulf %99, %98 : vector<8x8xf32>
    %cst_52 = arith.constant dense<0.000000e+00> : vector<8xf32>
    %101 = vector.multi_reduction <add>, %100, %cst_52 [0] : vector<8x8xf32> to vector<8xf32>
    %102 = vector.shape_cast %101 : vector<8xf32> to vector<1x8xf32>
    %103 = arith.mulf %93, %102 : vector<1x8xf32>
    %104 = arith.addf %85, %103 : vector<1x8xf32>
    %c3_i32 = arith.constant 3 : i32
    %105 = arith.index_cast %c3_i32 : i32 to index
    %c0_53 = arith.constant 0 : index
    %106 = vector.load %arg9[%105, %c0_53] : memref<8x8xf32, #tpu.memory_space<vmem>>, vector<1x8xf32>
    %cst_54 = arith.constant 1.000000e+00 : f32
    %107 = vector.broadcast %cst_54 : f32 to vector<1x8xf32>
    %108 = arith.subf %106, %107 : vector<1x8xf32>
    %109 = arith.index_cast %c3_i32 : i32 to index
    %c0_55 = arith.constant 0 : index
    %110 = vector.load %arg10[%109, %c0_55] : memref<8x8xf32, #tpu.memory_space<vmem>>, vector<1x8xf32>
    %cst_56 = arith.constant 1.000000e+00 : f32
    %111 = vector.broadcast %cst_56 : f32 to vector<1x8xf32>
    %112 = arith.subf %111, %110 : vector<1x8xf32>
    %c0_57 = arith.constant 0 : index
    %c0_58 = arith.constant 0 : index
    %113 = vector.load %arg9[%c0_57, %c0_58] : memref<8x8xf32, #tpu.memory_space<vmem>>, vector<8x8xf32>
    %114 = vector.broadcast %108 : vector<1x8xf32> to vector<8x8xf32>
    %115 = arith.subf %113, %114 : vector<8x8xf32>
    %cst_59 = arith.constant 0.000000e+00 : f32
    %116 = vector.broadcast %cst_59 : f32 to vector<8x8xf32>
    %117 = arith.maximumf %115, %116 : vector<8x8xf32>
    %c0_60 = arith.constant 0 : index
    %c0_61 = arith.constant 0 : index
    %118 = vector.load %arg10[%c0_60, %c0_61] : memref<8x8xf32, #tpu.memory_space<vmem>>, vector<8x8xf32>
    %119 = arith.mulf %118, %117 : vector<8x8xf32>
    %cst_62 = arith.constant dense<0.000000e+00> : vector<8xf32>
    %120 = vector.multi_reduction <add>, %119, %cst_62 [0] : vector<8x8xf32> to vector<8xf32>
    %121 = vector.shape_cast %120 : vector<8xf32> to vector<1x8xf32>
    %122 = arith.mulf %112, %121 : vector<1x8xf32>
    %123 = arith.addf %104, %122 : vector<1x8xf32>
    %c4_i32 = arith.constant 4 : i32
    %124 = arith.index_cast %c4_i32 : i32 to index
    %c0_63 = arith.constant 0 : index
    %125 = vector.load %arg9[%124, %c0_63] : memref<8x8xf32, #tpu.memory_space<vmem>>, vector<1x8xf32>
    %cst_64 = arith.constant 1.000000e+00 : f32
    %126 = vector.broadcast %cst_64 : f32 to vector<1x8xf32>
    %127 = arith.subf %125, %126 : vector<1x8xf32>
    %128 = arith.index_cast %c4_i32 : i32 to index
    %c0_65 = arith.constant 0 : index
    %129 = vector.load %arg10[%128, %c0_65] : memref<8x8xf32, #tpu.memory_space<vmem>>, vector<1x8xf32>
    %cst_66 = arith.constant 1.000000e+00 : f32
    %130 = vector.broadcast %cst_66 : f32 to vector<1x8xf32>
    %131 = arith.subf %130, %129 : vector<1x8xf32>
    %c0_67 = arith.constant 0 : index
    %c0_68 = arith.constant 0 : index
    %132 = vector.load %arg9[%c0_67, %c0_68] : memref<8x8xf32, #tpu.memory_space<vmem>>, vector<8x8xf32>
    %133 = vector.broadcast %127 : vector<1x8xf32> to vector<8x8xf32>
    %134 = arith.subf %132, %133 : vector<8x8xf32>
    %cst_69 = arith.constant 0.000000e+00 : f32
    %135 = vector.broadcast %cst_69 : f32 to vector<8x8xf32>
    %136 = arith.maximumf %134, %135 : vector<8x8xf32>
    %c0_70 = arith.constant 0 : index
    %c0_71 = arith.constant 0 : index
    %137 = vector.load %arg10[%c0_70, %c0_71] : memref<8x8xf32, #tpu.memory_space<vmem>>, vector<8x8xf32>
    %138 = arith.mulf %137, %136 : vector<8x8xf32>
    %cst_72 = arith.constant dense<0.000000e+00> : vector<8xf32>
    %139 = vector.multi_reduction <add>, %138, %cst_72 [0] : vector<8x8xf32> to vector<8xf32>
    %140 = vector.shape_cast %139 : vector<8xf32> to vector<1x8xf32>
    %141 = arith.mulf %131, %140 : vector<1x8xf32>
    %142 = arith.addf %123, %141 : vector<1x8xf32>
    %c5_i32 = arith.constant 5 : i32
    %143 = arith.index_cast %c5_i32 : i32 to index
    %c0_73 = arith.constant 0 : index
    %144 = vector.load %arg9[%143, %c0_73] : memref<8x8xf32, #tpu.memory_space<vmem>>, vector<1x8xf32>
    %cst_74 = arith.constant 1.000000e+00 : f32
    %145 = vector.broadcast %cst_74 : f32 to vector<1x8xf32>
    %146 = arith.subf %144, %145 : vector<1x8xf32>
    %147 = arith.index_cast %c5_i32 : i32 to index
    %c0_75 = arith.constant 0 : index
    %148 = vector.load %arg10[%147, %c0_75] : memref<8x8xf32, #tpu.memory_space<vmem>>, vector<1x8xf32>
    %cst_76 = arith.constant 1.000000e+00 : f32
    %149 = vector.broadcast %cst_76 : f32 to vector<1x8xf32>
    %150 = arith.subf %149, %148 : vector<1x8xf32>
    %c0_77 = arith.constant 0 : index
    %c0_78 = arith.constant 0 : index
    %151 = vector.load %arg9[%c0_77, %c0_78] : memref<8x8xf32, #tpu.memory_space<vmem>>, vector<8x8xf32>
    %152 = vector.broadcast %146 : vector<1x8xf32> to vector<8x8xf32>
    %153 = arith.subf %151, %152 : vector<8x8xf32>
    %cst_79 = arith.constant 0.000000e+00 : f32
    %154 = vector.broadcast %cst_79 : f32 to vector<8x8xf32>
    %155 = arith.maximumf %153, %154 : vector<8x8xf32>
    %c0_80 = arith.constant 0 : index
    %c0_81 = arith.constant 0 : index
    %156 = vector.load %arg10[%c0_80, %c0_81] : memref<8x8xf32, #tpu.memory_space<vmem>>, vector<8x8xf32>
    %157 = arith.mulf %156, %155 : vector<8x8xf32>
    %cst_82 = arith.constant dense<0.000000e+00> : vector<8xf32>
    %158 = vector.multi_reduction <add>, %157, %cst_82 [0] : vector<8x8xf32> to vector<8xf32>
    %159 = vector.shape_cast %158 : vector<8xf32> to vector<1x8xf32>
    %160 = arith.mulf %150, %159 : vector<1x8xf32>
    %161 = arith.addf %142, %160 : vector<1x8xf32>
    %c6_i32 = arith.constant 6 : i32
    %162 = arith.index_cast %c6_i32 : i32 to index
    %c0_83 = arith.constant 0 : index
    %163 = vector.load %arg9[%162, %c0_83] : memref<8x8xf32, #tpu.memory_space<vmem>>, vector<1x8xf32>
    %cst_84 = arith.constant 1.000000e+00 : f32
    %164 = vector.broadcast %cst_84 : f32 to vector<1x8xf32>
    %165 = arith.subf %163, %164 : vector<1x8xf32>
    %166 = arith.index_cast %c6_i32 : i32 to index
    %c0_85 = arith.constant 0 : index
    %167 = vector.load %arg10[%166, %c0_85] : memref<8x8xf32, #tpu.memory_space<vmem>>, vector<1x8xf32>
    %cst_86 = arith.constant 1.000000e+00 : f32
    %168 = vector.broadcast %cst_86 : f32 to vector<1x8xf32>
    %169 = arith.subf %168, %167 : vector<1x8xf32>
    %c0_87 = arith.constant 0 : index
    %c0_88 = arith.constant 0 : index
    %170 = vector.load %arg9[%c0_87, %c0_88] : memref<8x8xf32, #tpu.memory_space<vmem>>, vector<8x8xf32>
    %171 = vector.broadcast %165 : vector<1x8xf32> to vector<8x8xf32>
    %172 = arith.subf %170, %171 : vector<8x8xf32>
    %cst_89 = arith.constant 0.000000e+00 : f32
    %173 = vector.broadcast %cst_89 : f32 to vector<8x8xf32>
    %174 = arith.maximumf %172, %173 : vector<8x8xf32>
    %c0_90 = arith.constant 0 : index
    %c0_91 = arith.constant 0 : index
    %175 = vector.load %arg10[%c0_90, %c0_91] : memref<8x8xf32, #tpu.memory_space<vmem>>, vector<8x8xf32>
    %176 = arith.mulf %175, %174 : vector<8x8xf32>
    %cst_92 = arith.constant dense<0.000000e+00> : vector<8xf32>
    %177 = vector.multi_reduction <add>, %176, %cst_92 [0] : vector<8x8xf32> to vector<8xf32>
    %178 = vector.shape_cast %177 : vector<8xf32> to vector<1x8xf32>
    %179 = arith.mulf %169, %178 : vector<1x8xf32>
    %180 = arith.addf %161, %179 : vector<1x8xf32>
    %c7_i32 = arith.constant 7 : i32
    %181 = arith.index_cast %c7_i32 : i32 to index
    %c0_93 = arith.constant 0 : index
    %182 = vector.load %arg9[%181, %c0_93] : memref<8x8xf32, #tpu.memory_space<vmem>>, vector<1x8xf32>
    %cst_94 = arith.constant 1.000000e+00 : f32
    %183 = vector.broadcast %cst_94 : f32 to vector<1x8xf32>
    %184 = arith.subf %182, %183 : vector<1x8xf32>
    %185 = arith.index_cast %c7_i32 : i32 to index
    %c0_95 = arith.constant 0 : index
    %186 = vector.load %arg10[%185, %c0_95] : memref<8x8xf32, #tpu.memory_space<vmem>>, vector<1x8xf32>
    %cst_96 = arith.constant 1.000000e+00 : f32
    %187 = vector.broadcast %cst_96 : f32 to vector<1x8xf32>
    %188 = arith.subf %187, %186 : vector<1x8xf32>
    %c0_97 = arith.constant 0 : index
    %c0_98 = arith.constant 0 : index
    %189 = vector.load %arg9[%c0_97, %c0_98] : memref<8x8xf32, #tpu.memory_space<vmem>>, vector<8x8xf32>
    %190 = vector.broadcast %184 : vector<1x8xf32> to vector<8x8xf32>
    %191 = arith.subf %189, %190 : vector<8x8xf32>
    %cst_99 = arith.constant 0.000000e+00 : f32
    %192 = vector.broadcast %cst_99 : f32 to vector<8x8xf32>
    %193 = arith.maximumf %191, %192 : vector<8x8xf32>
    %c0_100 = arith.constant 0 : index
    %c0_101 = arith.constant 0 : index
    %194 = vector.load %arg10[%c0_100, %c0_101] : memref<8x8xf32, #tpu.memory_space<vmem>>, vector<8x8xf32>
    %195 = arith.mulf %194, %193 : vector<8x8xf32>
    %cst_102 = arith.constant dense<0.000000e+00> : vector<8xf32>
    %196 = vector.multi_reduction <add>, %195, %cst_102 [0] : vector<8x8xf32> to vector<8xf32>
    %197 = vector.shape_cast %196 : vector<8xf32> to vector<1x8xf32>
    %198 = arith.mulf %188, %197 : vector<1x8xf32>
    %199 = arith.addf %180, %198 : vector<1x8xf32>
    %c8_i32_103 = arith.constant 8 : i32
    %200 = vector.shape_cast %199 : vector<1x8xf32> to vector<1x1x8xf32>
    %cst_104 = arith.constant dense<0.000000e+00> : vector<1xf32>
    %201 = vector.multi_reduction <add>, %200, %cst_104 [1, 2] : vector<1x1x8xf32> to vector<1xf32>
    %202 = vector.shape_cast %201 : vector<1xf32> to vector<1x1x1xf32>
    %203 = vector.extract %202[0, 0, 0] : f32 from vector<1x1x1xf32>
    %204 = vector.broadcast %203 : f32 to vector<8x128xf32>
    %c0_105 = arith.constant 0 : index
    %c0_106 = arith.constant 0 : index
    %205 = vector.load %arg7[%c0_105, %c0_106] : memref<8x128xf32, #tpu.memory_space<vmem>>, vector<8x128xf32>
    tpu.vector_store %arg7[%c0_105, %c0_106], %204 {strides = array<i32>} : memref<8x128xf32, #tpu.memory_space<vmem>>, vector<8x128xf32>,
    %206 = vector.broadcast %46 : f32 to vector<8x128xf32>
    %c0_107 = arith.constant 0 : index
    %c0_108 = arith.constant 0 : index
    %207 = vector.load %arg8[%c0_107, %c0_108] : memref<8x128xf32, #tpu.memory_space<vmem>>, vector<8x128xf32>
    tpu.vector_store %arg8[%c0_107, %c0_108], %206 {strides = array<i32>} : memref<8x128xf32, #tpu.memory_space<vmem>>, vector<8x128xf32>,
    return
  }
  func.func @transform_0(%arg0: i32) -> (i32, i32) {
    %c0_i32 = arith.constant 0 : i32
    %c0_i32_0 = arith.constant 0 : i32
    return %arg0, %c0_i32 : i32, i32
  }
  func.func @transform_1(%arg0: i32) -> (i32, i32) {
    %c0_i32 = arith.constant 0 : i32
    %c0_i32_0 = arith.constant 0 : i32
    %c0_i32_1 = arith.constant 0 : i32
    return %c0_i32, %c0_i32_0 : i32, i32
  }
  func.func @transform_2(%arg0: i32) -> (i32, i32) {
    %c0_i32 = arith.constant 0 : i32
    %c0_i32_0 = arith.constant 0 : i32
    %c0_i32_1 = arith.constant 0 : i32
    return %c0_i32, %c0_i32_0 : i32, i32
  }
  func.func @transform_3(%arg0: i32) -> (i32, i32) {
    %c0_i32 = arith.constant 0 : i32
    %c0_i32_0 = arith.constant 0 : i32
    return %c0_i32, %arg0 : i32, i32
  }
  func.func @transform_4(%arg0: i32) -> (i32, i32) {
    %c0_i32 = arith.constant 0 : i32
    %c0_i32_0 = arith.constant 0 : i32
    %c0_i32_1 = arith.constant 0 : i32
    return %c0_i32, %c0_i32_0 : i32, i32
  }
  func.func @transform_5(%arg0: i32) -> (i32, i32) {
    %c0_i32 = arith.constant 0 : i32
    %c0_i32_0 = arith.constant 0 : i32
    return %c0_i32, %arg0 : i32, i32
  }
  func.func @transform_6(%arg0: i32) -> (i32, i32) {
    %c0_i32 = arith.constant 0 : i32
    %c0_i32_0 = arith.constant 0 : i32
    return %arg0, %c0_i32 : i32, i32
  }
  func.func @transform_7(%arg0: i32) -> (i32, i32) {
    %c0_i32 = arith.constant 0 : i32
    %c0_i32_0 = arith.constant 0 : i32
    return %arg0, %c0_i32 : i32, i32
  }
}

</mosaic_0001>

<llo_original>
// kernel: tpu_custom_call.1
$region0: #{tpu_custom_call.1}
  #allocation0 [shape = 'u32[]', space=smem, size = 0x4, offset = 0x4, fixed_abs, tag = 'smem constant byte address 0x4 - core index']
  #allocation1 [shape = 'u32[72,128]{1,0:T(1,128)}', space=vmem, size = 0x9000, scoped, tag = 'internal scratch']
  #allocation2 [shape = 'f32[8,8]{1,0:T(8,128)}', space=vmem, size = 0x1000, scoped, tag = 'scratch operand']
  #allocation3 [shape = 'f32[8,8]{1,0:T(8,128)}', space=vmem, size = 0x1000, scoped, tag = 'scratch operand']
  %s0 = inlined_call_operand.vmem [shape: f32[8,32], index: 0, kind: input, shape index: {}]
  %s1 = inlined_call_operand.vmem [shape: f32[8,32], index: 1, kind: input, shape index: {}]
  %s2 = inlined_call_operand.vmem [shape: f32[8,1], index: 2, kind: input, shape index: {}]
  %s3 = inlined_call_operand.vmem [shape: f32[1,8], index: 3, kind: input, shape index: {}]
  %s4 = inlined_call_operand.vmem [shape: s32[8,1], index: 4, kind: input, shape index: {}]
  %s5 = inlined_call_operand.vmem [shape: s32[1,8], index: 5, kind: input, shape index: {}]
  %s6 = inlined_call_operand.hbm [shape: f32[8,128], index: 6, kind: output, shape index: {0}]
  %s7 = inlined_call_operand.hbm [shape: f32[8,128], index: 7, kind: output, shape index: {1}]
  %8 = xla_tuple %s6, %s7
  %s9 = sld [smem:[#allocation0]]
  $region42: #{tpu_custom_call.1} parent=0
    _
  %s11 = ssub.s32 1, %s9
  %s12 = scalar_select 0, %s11, %s9
  $region1: #{tpu_custom_call.1} parent=0
    #allocation4 [shape = 'u8[4096]{0}', space=vmem, size = 0x1000, scoped, tag = 'output window, operand 0, single buffered']
    #allocation5 [shape = 's32[1]{0}', space=sflag, size = 0x4, scoped, tag = 'scoped memory for tpu_custom_call.1']
    #allocation6 [shape = 'u8[4096]{0}', space=vmem, size = 0x1000, scoped, tag = 'output window, operand 1, single buffered']
    #allocation7 [shape = 's32[1]{0}', space=sflag, size = 0x4, scoped, tag = 'scoped memory for tpu_custom_call.1']
    %13 = vsyncpa [#allocation5], 0
    %14 = vsyncpa [#allocation7], 0
    // Predicated region
    $region2: #{tpu_custom_call.1} parent=1 // pred_check
      _
    $region3: #{tpu_custom_call.1} parent=1 // pred_check_branch
      %16 = sbr.rel (0) target = $region5
    $region4: #{tpu_custom_call.1} parent=1 // pred_region
      _
    $region5: #{tpu_custom_call.1} parent=1 // pred_fallthru
      _
    // Predicated region
    $region6: #{tpu_custom_call.1} parent=1 // pred_check
      _
    $region7: #{tpu_custom_call.1} parent=1 // pred_check_branch
      %18 = sbr.rel (0) target = $region9
    $region8: #{tpu_custom_call.1} parent=1 // pred_region
      _
    $region9: #{tpu_custom_call.1} parent=1 // pred_fallthru
      _
    // Predicated region
    $region10: #{tpu_custom_call.1} parent=1 // pred_check
      _
    $region11: #{tpu_custom_call.1} parent=1 // pred_check_branch
      %20 = sbr.rel (0) target = $region13
    $region12: #{tpu_custom_call.1} parent=1 // pred_region
      _
    $region13: #{tpu_custom_call.1} parent=1 // pred_fallthru
      _
    // Predicated region
    $region14: #{tpu_custom_call.1} parent=1 // pred_check
      _
    $region15: #{tpu_custom_call.1} parent=1 // pred_check_branch
      %22 = sbr.rel (0) target = $region17
    $region16: #{tpu_custom_call.1} parent=1 // pred_region
      _
    $region17: #{tpu_custom_call.1} parent=1 // pred_fallthru
      _
    // Predicated region
    $region18: #{tpu_custom_call.1} parent=1 // pred_check
      _
    $region19: #{tpu_custom_call.1} parent=1 // pred_check_branch
      %24 = sbr.rel (0) target = $region21
    $region20: #{tpu_custom_call.1} parent=1 // pred_region
      _
    $region21: #{tpu_custom_call.1} parent=1 // pred_fallthru
      _
    // Predicated region
    $region22: #{tpu_custom_call.1} parent=1 // pred_check
      _
    $region23: #{tpu_custom_call.1} parent=1 // pred_check_branch
      %26 = sbr.rel (0) target = $region25
    $region24: #{tpu_custom_call.1} parent=1 // pred_region
      _
    $region25: #{tpu_custom_call.1} parent=1 // pred_fallthru
      _
    %v27 = vld [vmem:[%s1] sm:$0xff]
    %v28 = vld [vmem:[%s0] sm:$0xff]
    %vm29 = vcmask 261120
    %v31 = vsel %vm29, %v27, 0
    %v34 = vsel %vm29, %v28, 0
    %36 = vmatpush.xpose.msra.mxu0 0.0
    %37 = vmatpush.xpose.msra.mxu0 0.0
    %38 = vmatpush.xpose.msra.mxu0 0.0
    %39 = vmatpush.xpose.msra.mxu0 0.0
    %40 = vmatpush.xpose.msra.mxu0 0.0
    %41 = vmatpush.xpose.msra.mxu0 0.0
    %42 = vmatpush.xpose.msra.mxu0 0.0
    %43 = vmatpush.xpose.msra.mxu0 0.0
    %44 = vmatpush.xpose.msra.mxu0 0.0
    %45 = vmatpush.xpose.msra.mxu0 0.0
    %46 = vmatpush.xpose.msra.mxu0 0.0
    %47 = vmatpush.xpose.msra.mxu0 0.0
    %48 = vmatpush.xpose.msra.mxu0 0.0
    %49 = vmatpush.xpose.msra.mxu0 0.0
    %50 = vmatpush.xpose.msra.mxu0 0.0
    %51 = vmatpush.xpose.msra.mxu0 %v34
    %52 = vmatmul.f32.gmra.mxu0 %v31
    %v53 = vpop.f32.mrf.mxu0
    %v54 = vadd.f32 0.0, %v53
    %55 = vdwg.mxu0
    %v56 = vlaneseq
    %v57 = vshrl.u32 %v56, 7
    %s58 = smul.u32 0, 8
    %v59 = vlaneseq
    %v60 = vand.u32 %v59, 127
    %v61 = vstv %s58
    %v62 = vadd.s32 %v61, %v60
    %vm63 = vcmp.eq.s32.totalorder %v57, %v62
    %v64 = vld [vmem:[%s2] sm:$0xff]
    %v65 = vld [vmem:[%s3] sm:$0x1]
    %67 = vset.pattern.permute.xlu0 0
    %68 = vperm.xlu0 %67, %v64
    %v69 = vpop.permute.xlu0 %68
    %v72 = vperm.slane %v65, 0
    %v74 = vadd.f32 %v69, %v72
    %v75 = vmul.f32 %v54, 2.0
    %v76 = vsub.f32 %v74, %v75
    %v77 = vmax.f32 %v76, 0.0
    %v78 = vsel %vm63, 0.0, %v77
    %v79 = vmax.f32 %v78, 0.0001
    %v80 = vrsqrt.pop %v79
    %v81 = vmul.f32 %v80, %v79
    %v82 = vmul.f32 %v81, %v80
    %v83 = vmul.f32 0.5, %v82
    %v84 = vsub.f32 1.5, %v83
    %v85 = vmul.f32 %v80, %v84
    %v86 = vmul.f32 %v79, %v85
    %vm87 = vcmp.eq.f32.partialorder %v79, inf
    %v88 = vsel %vm87, %v79, %v86
    %vm89 = vcmp.eq.f32.partialorder %v79, 0.0
    %v90 = vand.u32 %v79, 2147483648
    %v91 = vsel %vm89, %v90, %v88
    %vm92 = vcmask 64512
    %93 = vst.msk [vmem:[#allocation2] sm:$0xff] %vm92, %v91
    %v94 = vld [vmem:[%s4] sm:$0xff]
    %v95 = vld [vmem:[%s5] sm:$0x1]
    %96 = vset.pattern.permute.xlu0 0
    %97 = vperm.xlu0 %96, %v94
    %v98 = vpop.permute.xlu0 %97
    %v99 = vperm.slane %v95, 0
    %vm100 = vcmp.eq.s32.totalorder %v98, %v99
    %v101 = vsel %vm100, 1, 0
    %v102 = vcvt.s32.f32 %v101
    %v103 = vsel %vm63, 1, 0
    %v104 = vcvt.s32.f32 %v103
    %v105 = vsub.f32 %v102, %v104
    %106 = vst.msk [vmem:[#allocation3] sm:$0xff] %vm92, %v105
    %v107 = vsel %vm92, %v105, 0.0
    %v108 = vrot.slane %v107, 4
    %v109 = vadd.f32 %v107, %v108
    %v110 = vrot.slane %v109, 2
    %v111 = vadd.f32 %v109, %v110
    %v112 = vrot.slane %v111, 1
    %v113 = vadd.f32 %v111, %v112
    %v114 = vsub.f32 8.0, %v113
    %v115 = vmul.f32 %v113, %v114
    %vm116 = vcmask 57344
    %v117 = vsel %vm116, %v115, 0.0
    %118 = vadd.xlane.f32.xlu0 %v117
    %v119 = vpop.xlane.xlu0 %118
    %v120 = vrot.slane %v119, 4
    %v121 = vadd.f32 %v119, %v120
    %v122 = vrot.slane %v121, 2
    %v123 = vadd.f32 %v121, %v122
    %v124 = vrot.slane %v123, 1
    %v125 = vadd.f32 %v123, %v124
    %s126 = vtos %v125
    %v127 = vld [vmem:[#allocation2] sm:$0x1]
    %v128 = vsub.f32 %v127, 1.0
    %v129 = vld [vmem:[#allocation3] sm:$0x1]
    %v130 = vsub.f32 1.0, %v129
    %v131 = vld [vmem:[#allocation2] sm:$0xff]
    %v132 = vperm.slane %v128, 0
    %v133 = vsub.f32 %v131, %v132
    %v134 = vmax.f32 %v133, 0.0
    %v135 = vld [vmem:[#allocation3] sm:$0xff]
    %v136 = vmul.f32 %v135, %v134
    %v137 = vsel %vm92, %v136, 0.0
    %v138 = vrot.slane %v137, 4
    %v139 = vadd.f32 %v137, %v138
    %v140 = vrot.slane %v139, 2
    %v141 = vadd.f32 %v139, %v140
    %v142 = vrot.slane %v141, 1
    %v143 = vadd.f32 %v141, %v142
    %v144 = vmul.f32 %v130, %v143
    %v145 = vadd.f32 %v144, 0.0
    %v146 = vld [vmem:[#allocation2 + $0x1] sm:$0x1]
    %v147 = vsub.f32 %v146, 1.0
    %v148 = vld [vmem:[#allocation3 + $0x1] sm:$0x1]
    %v149 = vsub.f32 1.0, %v148
    %v150 = vperm.slane %v147, 0
    %v151 = vsub.f32 %v131, %v150
    %v152 = vmax.f32 %v151, 0.0
    %v153 = vmul.f32 %v135, %v152
    %v154 = vsel %vm92, %v153, 0.0
    %v155 = vrot.slane %v154, 4
    %v156 = vadd.f32 %v154, %v155
    %v157 = vrot.slane %v156, 2
    %v158 = vadd.f32 %v156, %v157
    %v159 = vrot.slane %v158, 1
    %v160 = vadd.f32 %v158, %v159
    %v161 = vmul.f32 %v149, %v160
    %v162 = vadd.f32 %v145, %v161
    %v163 = vld [vmem:[#allocation2 + $0x2] sm:$0x1]
    %v164 = vsub.f32 %v163, 1.0
    %v165 = vld [vmem:[#allocation3 + $0x2] sm:$0x1]
    %v166 = vsub.f32 1.0, %v165
    %v167 = vperm.slane %v164, 0
    %v168 = vsub.f32 %v131, %v167
    %v169 = vmax.f32 %v168, 0.0
    %v170 = vmul.f32 %v135, %v169
    %v171 = vsel %vm92, %v170, 0.0
    %v172 = vrot.slane %v171, 4
    %v173 = vadd.f32 %v171, %v172
    %v174 = vrot.slane %v173, 2
    %v175 = vadd.f32 %v173, %v174
    %v176 = vrot.slane %v175, 1
    %v177 = vadd.f32 %v175, %v176
    %v178 = vmul.f32 %v166, %v177
    %v179 = vadd.f32 %v162, %v178
    %v180 = vld [vmem:[#allocation2 + $0x3] sm:$0x1]
    %v181 = vsub.f32 %v180, 1.0
    %v182 = vld [vmem:[#allocation3 + $0x3] sm:$0x1]
    %v183 = vsub.f32 1.0, %v182
    %v184 = vperm.slane %v181, 0
    %v185 = vsub.f32 %v131, %v184
    %v186 = vmax.f32 %v185, 0.0
    %v187 = vmul.f32 %v135, %v186
    %v188 = vsel %vm92, %v187, 0.0
    %v189 = vrot.slane %v188, 4
    %v190 = vadd.f32 %v188, %v189
    %v191 = vrot.slane %v190, 2
    %v192 = vadd.f32 %v190, %v191
    %v193 = vrot.slane %v192, 1
    %v194 = vadd.f32 %v192, %v193
    %v195 = vmul.f32 %v183, %v194
    %v196 = vadd.f32 %v179, %v195
    %v197 = vld [vmem:[#allocation2 + $0x4] sm:$0x1]
    %v198 = vsub.f32 %v197, 1.0
    %v199 = vld [vmem:[#allocation3 + $0x4] sm:$0x1]
    %v200 = vsub.f32 1.0, %v199
    %v201 = vperm.slane %v198, 0
    %v202 = vsub.f32 %v131, %v201
    %v203 = vmax.f32 %v202, 0.0
    %v204 = vmul.f32 %v135, %v203
    %v205 = vsel %vm92, %v204, 0.0
    %v206 = vrot.slane %v205, 4
    %v207 = vadd.f32 %v205, %v206
    %v208 = vrot.slane %v207, 2
    %v209 = vadd.f32 %v207, %v208
    %v210 = vrot.slane %v209, 1
    %v211 = vadd.f32 %v209, %v210
    %v212 = vmul.f32 %v200, %v211
    %v213 = vadd.f32 %v196, %v212
    %v214 = vld [vmem:[#allocation2 + $0x5] sm:$0x1]
    %v215 = vsub.f32 %v214, 1.0
    %v216 = vld [vmem:[#allocation3 + $0x5] sm:$0x1]
    %v217 = vsub.f32 1.0, %v216
    %v218 = vperm.slane %v215, 0
    %v219 = vsub.f32 %v131, %v218
    %v220 = vmax.f32 %v219, 0.0
    %v221 = vmul.f32 %v135, %v220
    %v222 = vsel %vm92, %v221, 0.0
    %v223 = vrot.slane %v222, 4
    %v224 = vadd.f32 %v222, %v223
    %v225 = vrot.slane %v224, 2
    %v226 = vadd.f32 %v224, %v225
    %v227 = vrot.slane %v226, 1
    %v228 = vadd.f32 %v226, %v227
    %v229 = vmul.f32 %v217, %v228
    %v230 = vadd.f32 %v213, %v229
    %v231 = vld [vmem:[#allocation2 + $0x6] sm:$0x1]
    %v232 = vsub.f32 %v231, 1.0
    %v233 = vld [vmem:[#allocation3 + $0x6] sm:$0x1]
    %v234 = vsub.f32 1.0, %v233
    %v235 = vperm.slane %v232, 0
    %v236 = vsub.f32 %v131, %v235
    %v237 = vmax.f32 %v236, 0.0
    %v238 = vmul.f32 %v135, %v237
    %v239 = vsel %vm92, %v238, 0.0
    %v240 = vrot.slane %v239, 4
    %v241 = vadd.f32 %v239, %v240
    %v242 = vrot.slane %v241, 2
    %v243 = vadd.f32 %v241, %v242
    %v244 = vrot.slane %v243, 1
    %v245 = vadd.f32 %v243, %v244
    %v246 = vmul.f32 %v234, %v245
    %v247 = vadd.f32 %v230, %v246
    %v248 = vld [vmem:[#allocation2 + $0x7] sm:$0x1]
    %v249 = vsub.f32 %v248, 1.0
    %v250 = vld [vmem:[#allocation3 + $0x7] sm:$0x1]
    %v251 = vsub.f32 1.0, %v250
    %v252 = vperm.slane %v249, 0
    %v253 = vsub.f32 %v131, %v252
    %v254 = vmax.f32 %v253, 0.0
    %v255 = vmul.f32 %v135, %v254
    %v256 = vsel %vm92, %v255, 0.0
    %v257 = vrot.slane %v256, 4
    %v258 = vadd.f32 %v256, %v257
    %v259 = vrot.slane %v258, 2
    %v260 = vadd.f32 %v258, %v259
    %v261 = vrot.slane %v260, 1
    %v262 = vadd.f32 %v260, %v261
    %v263 = vmul.f32 %v251, %v262
    %v264 = vadd.f32 %v247, %v263
    %v265 = vsel %vm116, %v264, 0.0
    %266 = vadd.xlane.f32.xlu0 %v265
    %v267 = vpop.xlane.xlu0 %266
    %v268 = vrot.slane %v267, 4
    %v269 = vadd.f32 %v267, %v268
    %v270 = vrot.slane %v269, 2
    %v271 = vadd.f32 %v269, %v270
    %v272 = vrot.slane %v271, 1
    %v273 = vadd.f32 %v271, %v272
    %s274 = vtos %v273
    %v275 = vstv %s274
    %276 = vst [vmem:[#allocation4] sm:$0xff] %v275
    %v277 = vstv %s126
    %278 = vst [vmem:[#allocation6] sm:$0xff] %v277
    // Predicated region
    $region26: #{tpu_custom_call.1} parent=1 // pred_check
      _
    $region27: #{tpu_custom_call.1} parent=1 // pred_check_branch
      %280 = sbr.rel (0) target = $region29
    $region28: #{tpu_custom_call.1} parent=1 // pred_region
      %282 = vsyncadd [#allocation5], 0
      %s284 = sshll.u32 [#allocation4], 4
      %s285 = int_to_ptr.vmem [resolvable:$true] %s284
      %s286 = sshll.u32 %s6, 4
      %s287 = int_to_ptr.hbm [resolvable:$true] %s286
      %289 = dma.vmem_to_hbm [thread:$0]  %s285, 128, %s287, [#allocation5]
    $region29: #{tpu_custom_call.1} parent=1 // pred_fallthru
      _
    // Predicated region
    $region30: #{tpu_custom_call.1} parent=1 // pred_check
      _
    $region31: #{tpu_custom_call.1} parent=1 // pred_check_branch
      %291 = sbr.rel (0) target = $region33
    $region32: #{tpu_custom_call.1} parent=1 // pred_region
      %293 = vsyncadd [#allocation7], 0
      %s295 = sshll.u32 [#allocation6], 4
      %s296 = int_to_ptr.vmem [resolvable:$true] %s295
      %s297 = sshll.u32 %s7, 4
      %s298 = int_to_ptr.hbm [resolvable:$true] %s297
      %300 = dma.vmem_to_hbm [thread:$0]  %s296, 128, %s298, [#allocation7]
    $region33: #{tpu_custom_call.1} parent=1 // pred_fallthru
      _
    // Predicated region
    $region34: #{tpu_custom_call.1} parent=1 // pred_check
      _
    $region35: #{tpu_custom_call.1} parent=1 // pred_check_branch
      %302 = sbr.rel (0) target = $region37
    $region36: #{tpu_custom_call.1} parent=1 // pred_region
      %304 = dma.done [#allocation5], 128
    $region37: #{tpu_custom_call.1} parent=1 // pred_fallthru
      _
    // Predicated region
    $region38: #{tpu_custom_call.1} parent=1 // pred_check
      _
    $region39: #{tpu_custom_call.1} parent=1 // pred_check_branch
      %306 = sbr.rel (0) target = $region41
    $region40: #{tpu_custom_call.1} parent=1 // pred_region
      %308 = dma.done [#allocation7], 128
    $region41: #{tpu_custom_call.1} parent=1 // pred_fallthru
      _
    %309 = vsyncpa [#allocation5], 1
    %310 = vsyncpa [#allocation7], 1

</llo_original>
